<compile_context>
chip_gen: v6e
topology: v6e:2x2x1
jax: 0.10.0
libtpu: 0.0.40
codegen_flags: <defaults>
</compile_context>

<pallas_src>
import numpy as np
import jax
import jax.numpy as jnp
from jax import lax
from jax.experimental import pallas as pl
from jax.experimental.pallas import tpu as pltpu


# ----------------------------- irreps "info" ------------------------------ #
# irreps is a list of (mul, l) tuples, e.g. "4x0e + 2x1o + 1x2e".
IRREPS = [(4, 0), (2, 1), (1, 2)]   # dims: 4*1 + 2*3 + 1*5 = 15, channels = 7

_P = 128          # batch rows packed into the lane dimension (lane width = _P*D)
_MAX_TILE = 512   # packed rows per grid step (512*1920*4B = 3.75 MiB f32 block)


def _cdiv(a, b):
    return -(-a // b)


def irreps_dim(irreps):
    return sum(mul * (2 * l + 1) for mul, l in irreps)


def irreps_num_channels(irreps):
    return sum(mul for mul, _ in irreps)


# ------------------------------ Pallas kernel ------------------------------ #
def _make_bmsn_kernel(tile, L, n_packed):
    """Sum-of-squares accumulator kernel.

    xp_ref : [tile, L]  lane-dense packed activations (L = 128 * irreps_dim)
    acc_ref: [R, L]     persistent f32 accumulator / output block (R = 8 or 1)
    """
    partial_last = (n_packed % tile) != 0
    groups = tile // 8 if (tile % 8 == 0) else 0

    def kernel(xp_ref, acc_ref):
        @pl.when(pl.program_id(0) == 0)
        def _init():
            acc_ref[...] = jnp.zeros_like(acc_ref)

        # Hot path: pure VPU square + accumulate (no MXU, no cross-lane work).
        x = xp_ref[...].astype(jnp.float32)
        if partial_last:
            # Rows past n_packed in the clamped last block hold unspecified
            # data; zero them before squaring so they contribute nothing.
            valid = n_packed - pl.program_id(0) * tile
            row = lax.broadcasted_iota(jnp.int32, (tile, 1), 0)
            x = jnp.where(row < valid, x, 0.0)
        x2 = x * x
        if groups:
            # Sublane-group fold: keeps the resident accumulator at [8, L]
            # (~60 KiB) regardless of tile size; still only VPU adds.
            acc_ref[...] += x2.reshape(groups, 8, L).sum(axis=0)
        else:
            acc_ref[...] += jnp.sum(x2, axis=0, keepdims=True)

    return kernel


def _kernel_component_sums(xp, n_packed, D, itemsize):
    """Kernel call: returns sum over all packed rows of x**2 per flat
    component -> [D] float32."""
    L = _P * D
    if n_packed >= 8:
        tile = min(_MAX_TILE, (n_packed // 8) * 8)
    else:
        tile = n_packed                 # block equals full leading dim
    steps = _cdiv(n_packed, tile)
    R = 8 if tile % 8 == 0 else 1

    out = pl.pallas_call(
        _make_bmsn_kernel(tile, L, n_packed),
        out_shape=jax.ShapeDtypeStruct((R, L), jnp.float32),
        grid_spec=pltpu.PrefetchScalarGridSpec(
            num_scalar_prefetch=0,
            grid=(steps,),
            in_specs=[pl.BlockSpec((tile, L), lambda i: (i, 0))],
            out_specs=pl.BlockSpec((R, L), lambda i: (0, 0)),
        ),
        compiler_params=pltpu.CompilerParams(
            dimension_semantics=("arbitrary",)),
        cost_estimate=pl.CostEstimate(
            flops=2 * n_packed * L,
            transcendentals=0,
            bytes_accessed=n_packed * L * itemsize + R * L * 4),
    )(xp)
    # [R, L] -> [L] -> [_P, D] -> [D]
    return out.sum(axis=0).reshape(_P, D).sum(axis=0)


def batch_mean_squared_norm(x, irreps, scaled):
    """x: [batch, irreps_dim] (any float dtype) -> [total_mul] float32."""
    B, D = x.shape
    assert D == irreps_dim(irreps)

    n_packed = B // _P
    comp_sums = jnp.zeros((D,), jnp.float32)

    if n_packed > 0:
        B_main = n_packed * _P
        if B_main == B:
            # Fast path: pure reshape, zero extra HBM traffic.
            xp = x.reshape(n_packed, _P * D)
        else:
            # TODO(synk): unaligned B still materializes one bulk slice; a
            # memory_space=pl.ANY manual-DMA path could remove it entirely.
            xp = x[:B_main].reshape(n_packed, _P * D)
        comp_sums = _kernel_component_sums(xp, n_packed, D, x.dtype.itemsize)

    if n_packed * _P < B:
        # Tail of < 128 rows: negligible, handled in plain JAX (no pad copy).
        tail = x[n_packed * _P:].astype(jnp.float32)
        comp_sums = comp_sums + jnp.sum(tail * tail, axis=0)

    # Exact per-channel segment sums + optional 1/(2l+1) + 1/B batch mean,
    # all on a length-D vector (tiny XLA ops, no MXU precision issues).
    outs = []
    off = 0
    for mul, l in irreps:
        dim = 2 * l + 1
        seg = comp_sums[off:off + mul * dim].reshape(mul, dim).sum(axis=-1)
        if scaled:
            seg = seg / dim
        outs.append(seg)
        off += mul * dim
    return (jnp.concatenate(outs) / B).astype(jnp.float32)


# ----------------------------- pure-JAX reference --------------------------- #
def ref_batch_mean_squared_norm(x, irreps, scaled):
    xf = x.astype(jnp.float32)
    outs = []
    off = 0
    for mul, l in irreps:
        dim = 2 * l + 1
        blk = xf[:, off:off + mul * dim].reshape(x.shape[0], mul, dim)
        sq = jnp.sum(blk * blk, axis=-1)
        if scaled:
            sq = sq / dim
        outs.append(jnp.mean(sq, axis=0))
        off += mul * dim
    return jnp.concatenate(outs).astype(jnp.float32)


# ---------------------------------- main ----------------------------------- #
if __name__ == "__main__":
    key = jax.random.PRNGKey(0)
    D = irreps_dim(IRREPS)           # 15

    ok = True
    # batch=8   : tiny, pure-JAX tail path
    # batch=1200: unaligned -> kernel bulk (masked last block) + JAX tail
    # batch=2048: aligned fast path -> pure reshape, kernel only
    for batch in (8, 1200, 2048):
        k = jax.random.fold_in(key, batch)
        x = jax.random.normal(k, (batch, D), dtype=jnp.float32)
        for scaled in (True, False):
            out = jax.block_until_ready(
                batch_mean_squared_norm(x, IRREPS, scaled))
            ref = ref_batch_mean_squared_norm(x, IRREPS, scaled)
            if not np.allclose(np.asarray(out), np.asarray(ref),
                               rtol=1e-5, atol=1e-5):
                ok = False

    print("KERNEL_OK" if ok else "KERNEL_MISMATCH")
</pallas_src>

<mosaic_0001>
module attributes {stable_mosaic.version = 11 : i64} {
  func.func @kernel(%arg0: i32, %arg1: memref<8x1920xf32, #tpu.memory_space<vmem>>, %arg2: memref<8x1920xf32, #tpu.memory_space<vmem>>) attributes {dimension_semantics = [#tpu.dimension_semantics<arbitrary>], iteration_bounds = array<i64: 2>, scalar_prefetch = 0 : i64, scratch_operands = 0 : i64, tpu.core_type = #tpu.core_type<tc>, window_params = [{transform_indices = @transform_0, window_bounds = array<i64: 8, 1920>}, {pipeline_mode = #tpu.pipeline_mode<synchronous>, transform_indices = @transform_1, window_bounds = array<i64: 8, 1920>}]} {
    %c0_i32 = arith.constant 0 : i32
    %0 = arith.cmpi eq, %arg0, %c0_i32 : i32
    %1 = arith.extui %0 : i1 to i32
    %c0_i32_0 = arith.constant 0 : i32
    %2 = arith.cmpi ne, %1, %c0_i32_0 : i32
    scf.if %2 {
      %cst_7 = arith.constant 0.000000e+00 : f32
      %19 = vector.broadcast %cst_7 : f32 to vector<8x1920xf32>
      %c0_8 = arith.constant 0 : index
      %c0_9 = arith.constant 0 : index
      %20 = vector.load %arg2[%c0_8, %c0_9] : memref<8x1920xf32, #tpu.memory_space<vmem>>, vector<8x1920xf32>
      tpu.vector_store %arg2[%c0_8, %c0_9], %19 {strides = array<i32>} : memref<8x1920xf32, #tpu.memory_space<vmem>>, vector<8x1920xf32>,
    } else {
    }
    %c0 = arith.constant 0 : index
    %c0_1 = arith.constant 0 : index
    %3 = vector.load %arg1[%c0, %c0_1] : memref<8x1920xf32, #tpu.memory_space<vmem>>, vector<8x1920xf32>
    %c8_i32 = arith.constant 8 : i32
    %4 = arith.muli %arg0, %c8_i32 : i32
    %c9_i32 = arith.constant 9 : i32
    %5 = arith.subi %c9_i32, %4 : i32
    %6 = tpu.iota {dimensions = array<i32: 0>} : vector<8x1xi32>
    %7 = vector.broadcast %5 : i32 to vector<8x1xi32>
    %8 = arith.cmpi slt, %6, %7 : vector<8x1xi32>
    %cst = arith.constant 0.000000e+00 : f32
    %9 = vector.shape_cast %8 : vector<8x1xi1> to vector<8x1xi1>
    %10 = vector.broadcast %9 : vector<8x1xi1> to vector<8x1920xi1>
    %11 = vector.broadcast %cst : f32 to vector<8x1920xf32>
    %12 = arith.select %10, %3, %11 : vector<8x1920xi1>, vector<8x1920xf32>
    %13 = arith.mulf %12, %12 : vector<8x1920xf32>
    %c0_2 = arith.constant 0 : index
    %c0_3 = arith.constant 0 : index
    %14 = vector.load %arg2[%c0_2, %c0_3] : memref<8x1920xf32, #tpu.memory_space<vmem>>, vector<8x1920xf32>
    %15 = vector.shape_cast %13 : vector<8x1920xf32> to vector<1x8x1920xf32>
    %cst_4 = arith.constant dense<0.000000e+00> : vector<8x1920xf32>
    %16 = vector.multi_reduction <add>, %15, %cst_4 [0] : vector<1x8x1920xf32> to vector<8x1920xf32>
    %17 = arith.addf %14, %16 : vector<8x1920xf32>
    %c0_5 = arith.constant 0 : index
    %c0_6 = arith.constant 0 : index
    %18 = vector.load %arg2[%c0_5, %c0_6] : memref<8x1920xf32, #tpu.memory_space<vmem>>, vector<8x1920xf32>
    tpu.vector_store %arg2[%c0_5, %c0_6], %17 {strides = array<i32>} : memref<8x1920xf32, #tpu.memory_space<vmem>>, vector<8x1920xf32>,
    return
  }
  func.func @transform_0(%arg0: i32) -> (i32, i32) {
    %c0_i32 = arith.constant 0 : i32
    %c0_i32_0 = arith.constant 0 : i32
    return %arg0, %c0_i32 : i32, i32
  }
  func.func @transform_1(%arg0: i32) -> (i32, i32) {
    %c0_i32 = arith.constant 0 : i32
    %c0_i32_0 = arith.constant 0 : i32
    %c0_i32_1 = arith.constant 0 : i32
    return %c0_i32, %c0_i32_0 : i32, i32
  }
}

</mosaic_0001>

<llo_original>
// kernel: tpu_custom_call.1
$region0: #{tpu_custom_call.1}
  #allocation0 [shape = 'u32[]', space=smem, size = 0x4, offset = 0x4, fixed_abs, tag = 'smem constant byte address 0x4 - core index']
  #allocation1 [shape = 'u32[144,128]{1,0:T(1,128)}', space=vmem, size = 0x12000, scoped, tag = 'internal scratch']
  %s0 = inlined_call_operand.hbm [shape: f32[9,1920], index: 0, kind: input, shape index: {}]
  %s1 = inlined_call_operand.hbm [shape: f32[8,1920], index: 1, kind: output, shape index: {}]
  %s2 = sld [smem:[#allocation0]]
  $region45: #{tpu_custom_call.1} parent=0
    _
  %s4 = ssub.s32 1, %s2
  %s5 = scalar_select 0, %s4, %s2
  $region1: #{tpu_custom_call.1} parent=0
    #allocation2 [shape = 'u8[122880]{0}', space=vmem, size = 0x1e000, scoped, tag = 'input window, operand 0']
    #allocation3 [shape = 's32[2]{0}', space=sflag, size = 0x8, scoped, tag = 'scoped memory for tpu_custom_call.1']
    #allocation4 [shape = 's32[2]{0}', space=sflag, size = 0x8, scoped, tag = 'scoped memory for tpu_custom_call.1']
    #allocation5 [shape = 'u8[61440]{0}', space=vmem, size = 0xf000, scoped, tag = 'output window, operand 0, single buffered']
    %6 = vsyncpa [#allocation3], 0
    %s7 = scalar_lea.sflag [#allocation3], 1
    %8 = vsyncpa %s7, 0
    %9 = vsyncpa [#allocation4], 0
    loop: start=0, step=1, limit=4
    $region2: #{tpu_custom_call.1} parent=1 // loop_pre_header
      _
    $region3: #{tpu_custom_call.1} parent=1 // loop_header
      %s11 = sphi 0, %s15
      %p12 = scmp.ge.s32.totalorder %s11, 4
      %s21 = sphi 0, %s23
      %s24 = sphi 0, %s21
      %s25 = sphi 0, %s24
      %s41 = sphi 0, %s25
      %s45 = sphi 0, %s45
      %s47 = sphi 0, %s45
      %s48 = sphi 0, %s47
      %s62 = sphi 0, %s48
    $region4: #{tpu_custom_call.1} parent=1 // loop_header_branch
      %14 = sbr.rel (%p12) target = $region8
    $region5: #{tpu_custom_call.1} parent=1 // loop_body
      %s16 = ssub.s32 %s11, 1
      %s17 = ssub.s32 %s11, 2
      %s18 = sadd.s32 %s11, 1
      %s19 = ssub.s32 %s11, %s18
      %p20 = scmp.eq.s32.totalorder %s19, 0
      %s22 = sadd.s32 %s21, 1
      %s23 = scalar_select %p20, %s21, %s22
      %p26 = pneg %p20
      %p27 = scmp.eq.s32.totalorder %s11, 1
      %p28 = por %p26, %p27
      %p29 = scmp.ne.s32.totalorder %s21, %s24
      %p30 = scmp.eq.s32.totalorder %s11, 0
      %p31 = por %p29, %p30
      %p32 = scmp.ne.s32.totalorder %s21, %s24
      %p33 = scmp.eq.s32.totalorder %s16, 1
      %p34 = por %p32, %p33
      %p35 = scmp.ne.s32.totalorder %s24, %s25
      %p36 = scmp.eq.s32.totalorder %s16, 0
      %p37 = por %p35, %p36
      %p38 = scmp.ne.s32.totalorder %s24, %s25
      %p39 = scmp.eq.s32.totalorder %s17, 1
      %p40 = por %p38, %p39
      %p42 = scmp.ne.s32.totalorder %s25, %s41
      %p43 = scmp.eq.s32.totalorder %s17, 0
      %p44 = por %p42, %p43
      %s46 = sadd.s32 %s45, 1
      %p49 = scmp.eq.s32.totalorder %s11, 1
      %p50 = scmp.ne.s32.totalorder %s45, %s47
      %p51 = scmp.eq.s32.totalorder %s11, 0
      %p52 = por %p50, %p51
      %p53 = scmp.ne.s32.totalorder %s45, %s47
      %p54 = scmp.eq.s32.totalorder %s16, 1
      %p55 = por %p53, %p54
      %p56 = scmp.ne.s32.totalorder %s47, %s48
      %p57 = scmp.eq.s32.totalorder %s16, 0
      %p58 = por %p56, %p57
      %p59 = scmp.ne.s32.totalorder %s47, %s48
      %p60 = scmp.eq.s32.totalorder %s17, 1
      %p61 = por %p59, %p60
      %p63 = scmp.ne.s32.totalorder %s48, %s62
      %p64 = scmp.eq.s32.totalorder %s17, 0
      %p65 = por %p63, %p64
      %p66 = scmp.le.s32.totalorder 1, %s11
      %p67 = scmp.lt.s32.totalorder %s11, 3
      %p68 = pnand %p66, %p67
      %p69 = pneg %p68
      // Predicated region
      $region9: #{tpu_custom_call.1} parent=5 // pred_check
        _
      $region10: #{tpu_custom_call.1} parent=5 // pred_check_branch
        %71 = sbr.rel (%p68) target = $region12
      $region11: #{tpu_custom_call.1} parent=5 // pred_region
        %s72 = ssub.s32 %s11, 1
      $region12: #{tpu_custom_call.1} parent=5 // pred_fallthru
        _
      %p73 = scmp.lt.s32.totalorder %s11, 2
      // Predicated region
      $region13: #{tpu_custom_call.1} parent=5 // pred_check
        %p74 = pneg %p73
      $region14: #{tpu_custom_call.1} parent=5 // pred_check_branch
        %76 = sbr.rel (%p74) target = $region16
      $region15: #{tpu_custom_call.1} parent=5 // pred_region
        // Predicated region
        $region17: #{tpu_custom_call.1} parent=15 // pred_check
          %p77 = pneg %p31
        $region18: #{tpu_custom_call.1} parent=15 // pred_check_branch
          %79 = sbr.rel (%p77) target = $region20
        $region19: #{tpu_custom_call.1} parent=15 // pred_region
          %s80 = sand.u32 %s21, 1
          %s81 = scalar_lea.sflag [#allocation3], %s80
          %s82 = sand.u32 %s21, 1
          %s83 = smul.addr %s82, 120
          %s84 = scalar_lea.vmem [#allocation2], %s83
          %s86 = ssub.s32 1920, 1920
          %87 = vsyncadd %s81, %s86
          %s88 = smul.addr %s11, 15
          %s89 = smul.addr %s88, 128
          %s90 = scalar_lea.hbm %s0, %s89
          %s92 = sshll.u32 %s84, 4
          %s93 = int_to_ptr.vmem [resolvable:$true] %s92
          %95 = dma.hbm_to_vmem [thread:$0]  %s90, 1920, %s93, %s81
        $region20: #{tpu_custom_call.1} parent=15 // pred_fallthru
          _
      $region16: #{tpu_custom_call.1} parent=5 // pred_fallthru
        _
      %p96 = scmp.le.s32.totalorder 1, %s11
      %p97 = scmp.lt.s32.totalorder %s11, 3
      %p98 = pnand %p96, %p97
      %p99 = pneg %p98
      // Predicated region
      $region21: #{tpu_custom_call.1} parent=5 // pred_check
        _
      $region22: #{tpu_custom_call.1} parent=5 // pred_check_branch
        %101 = sbr.rel (%p98) target = $region24
      $region23: #{tpu_custom_call.1} parent=5 // pred_region
        %s102 = ssub.s32 %s11, 1
        %s103 = sand.u32 %s24, 1
        %s104 = scalar_lea.sflag [#allocation3], %s103
        %s105 = sand.u32 %s24, 1
        %s106 = smul.addr %s105, 120
        %s107 = scalar_lea.vmem [#allocation2], %s106
        // Predicated region
        $region25: #{tpu_custom_call.1} parent=23 // pred_check
          %p108 = pneg %p37
        $region26: #{tpu_custom_call.1} parent=23 // pred_check_branch
          %110 = sbr.rel (%p108) target = $region28
        $region27: #{tpu_custom_call.1} parent=23 // pred_region
          %111 = dma.done %s104, 1920
        $region28: #{tpu_custom_call.1} parent=23 // pred_fallthru
          _
        %s112 = sand.u32 %s24, 1
        %s113 = scalar_lea.sflag [#allocation3], %s112
        %s114 = sand.u32 %s24, 1
        %s115 = smul.addr %s114, 120
        %s116 = scalar_lea.vmem [#allocation2], %s115
        %p117 = pneg %p37
        %p118 = pneg %p34
        %p119 = pneg %p58
        %p120 = pneg %p55
        %p121 = scmp.eq.s32.totalorder %s16, 0
        // Predicated region
        $region29: #{tpu_custom_call.1} parent=23 // pred_check
          %p122 = pneg %p121
        $region30: #{tpu_custom_call.1} parent=23 // pred_check_branch
          %124 = sbr.rel (%p122) target = $region32
        $region31: #{tpu_custom_call.1} parent=23 // pred_region
          %125 = vst [vmem:[#allocation5] sm:$0xff] 0.0
          %126 = vst [vmem:[#allocation5 + $0x8] sm:$0xff] 0.0
          %127 = vst [vmem:[#allocation5 + $0x10] sm:$0xff] 0.0
          %128 = vst [vmem:[#allocation5 + $0x18] sm:$0xff] 0.0
          %129 = vst [vmem:[#allocation5 + $0x20] sm:$0xff] 0.0
          %130 = vst [vmem:[#allocation5 + $0x28] sm:$0xff] 0.0
          %131 = vst [vmem:[#allocation5 + $0x30] sm:$0xff] 0.0
          %132 = vst [vmem:[#allocation5 + $0x38] sm:$0xff] 0.0
          %133 = vst [vmem:[#allocation5 + $0x40] sm:$0xff] 0.0
          %134 = vst [vmem:[#allocation5 + $0x48] sm:$0xff] 0.0
          %135 = vst [vmem:[#allocation5 + $0x50] sm:$0xff] 0.0
          %136 = vst [vmem:[#allocation5 + $0x58] sm:$0xff] 0.0
          %137 = vst [vmem:[#allocation5 + $0x60] sm:$0xff] 0.0
          %138 = vst [vmem:[#allocation5 + $0x68] sm:$0xff] 0.0
          %139 = vst [vmem:[#allocation5 + $0x70] sm:$0xff] 0.0
        $region32: #{tpu_custom_call.1} parent=23 // pred_fallthru
          _
        %v140 = vld [vmem:[%s107] sm:$0xff]
        %v141 = vld [vmem:[%s107 + $0x8] sm:$0xff]
        %v142 = vld [vmem:[%s107 + $0x10] sm:$0xff]
        %v143 = vld [vmem:[%s107 + $0x18] sm:$0xff]
        %v144 = vld [vmem:[%s107 + $0x20] sm:$0xff]
        %v145 = vld [vmem:[%s107 + $0x28] sm:$0xff]
        %v146 = vld [vmem:[%s107 + $0x30] sm:$0xff]
        %v147 = vld [vmem:[%s107 + $0x38] sm:$0xff]
        %v148 = vld [vmem:[%s107 + $0x40] sm:$0xff]
        %v149 = vld [vmem:[%s107 + $0x48] sm:$0xff]
        %v150 = vld [vmem:[%s107 + $0x50] sm:$0xff]
        %v151 = vld [vmem:[%s107 + $0x58] sm:$0xff]
        %v152 = vld [vmem:[%s107 + $0x60] sm:$0xff]
        %v153 = vld [vmem:[%s107 + $0x68] sm:$0xff]
        %v154 = vld [vmem:[%s107 + $0x70] sm:$0xff]
        %s155 = smul.u32 %s16, 8
        %s156 = ssub.s32 9, %s155
        %v157 = vlaneseq
        %v158 = vshrl.u32 %v157, 7
        %v159 = vstv %s156
        %vm160 = vcmp.lt.s32.totalorder %v158, %v159
        %v161 = vsel %vm160, 1, 0
        %vm162 = vcmp.eq.s32.totalorder %v161, 1
        %v163 = vsel %vm162, %v140, 0.0
        %v164 = vsel %vm162, %v141, 0.0
        %v165 = vsel %vm162, %v142, 0.0
        %v166 = vsel %vm162, %v143, 0.0
        %v167 = vsel %vm162, %v144, 0.0
        %v168 = vsel %vm162, %v145, 0.0
        %v169 = vsel %vm162, %v146, 0.0
        %v170 = vsel %vm162, %v147, 0.0
        %v171 = vsel %vm162, %v148, 0.0
        %v172 = vsel %vm162, %v149, 0.0
        %v173 = vsel %vm162, %v150, 0.0
        %v174 = vsel %vm162, %v151, 0.0
        %v175 = vsel %vm162, %v152, 0.0
        %v176 = vsel %vm162, %v153, 0.0
        %v177 = vsel %vm162, %v154, 0.0
        %v178 = vmul.f32 %v163, %v163
        %v179 = vmul.f32 %v164, %v164
        %v180 = vmul.f32 %v165, %v165
        %v181 = vmul.f32 %v166, %v166
        %v182 = vmul.f32 %v167, %v167
        %v183 = vmul.f32 %v168, %v168
        %v184 = vmul.f32 %v169, %v169
        %v185 = vmul.f32 %v170, %v170
        %v186 = vmul.f32 %v171, %v171
        %v187 = vmul.f32 %v172, %v172
        %v188 = vmul.f32 %v173, %v173
        %v189 = vmul.f32 %v174, %v174
        %v190 = vmul.f32 %v175, %v175
        %v191 = vmul.f32 %v176, %v176
        %v192 = vmul.f32 %v177, %v177
        %v193 = vld [vmem:[#allocation5] sm:$0xff]
        %v194 = vld [vmem:[#allocation5 + $0x8] sm:$0xff]
        %v195 = vld [vmem:[#allocation5 + $0x10] sm:$0xff]
        %v196 = vld [vmem:[#allocation5 + $0x18] sm:$0xff]
        %v197 = vld [vmem:[#allocation5 + $0x20] sm:$0xff]
        %v198 = vld [vmem:[#allocation5 + $0x28] sm:$0xff]
        %v199 = vld [vmem:[#allocation5 + $0x30] sm:$0xff]
        %v200 = vld [vmem:[#allocation5 + $0x38] sm:$0xff]
        %v201 = vld [vmem:[#allocation5 + $0x40] sm:$0xff]
        %v202 = vld [vmem:[#allocation5 + $0x48] sm:$0xff]
        %v203 = vld [vmem:[#allocation5 + $0x50] sm:$0xff]
        %v204 = vld [vmem:[#allocation5 + $0x58] sm:$0xff]
        %v205 = vld [vmem:[#allocation5 + $0x60] sm:$0xff]
        %v206 = vld [vmem:[#allocation5 + $0x68] sm:$0xff]
        %v207 = vld [vmem:[#allocation5 + $0x70] sm:$0xff]
        %v208 = vadd.f32 %v178, 0.0
        %v209 = vadd.f32 %v179, 0.0
        %v210 = vadd.f32 %v180, 0.0
        %v211 = vadd.f32 %v181, 0.0
        %v212 = vadd.f32 %v182, 0.0
        %v213 = vadd.f32 %v183, 0.0
        %v214 = vadd.f32 %v184, 0.0
        %v215 = vadd.f32 %v185, 0.0
        %v216 = vadd.f32 %v186, 0.0
        %v217 = vadd.f32 %v187, 0.0
        %v218 = vadd.f32 %v188, 0.0
        %v219 = vadd.f32 %v189, 0.0
        %v220 = vadd.f32 %v190, 0.0
        %v221 = vadd.f32 %v191, 0.0
        %v222 = vadd.f32 %v192, 0.0
        %v223 = vadd.f32 %v193, %v208
        %v224 = vadd.f32 %v194, %v209
        %v225 = vadd.f32 %v195, %v210
        %v226 = vadd.f32 %v196, %v211
        %v227 = vadd.f32 %v197, %v212
        %v228 = vadd.f32 %v198, %v213
        %v229 = vadd.f32 %v199, %v214
        %v230 = vadd.f32 %v200, %v215
        %v231 = vadd.f32 %v201, %v216
        %v232 = vadd.f32 %v202, %v217
        %v233 = vadd.f32 %v203, %v218
        %v234 = vadd.f32 %v204, %v219
        %v235 = vadd.f32 %v205, %v220
        %v236 = vadd.f32 %v206, %v221
        %v237 = vadd.f32 %v207, %v222
        %238 = vst [vmem:[#allocation5] sm:$0xff] %v223
        %239 = vst [vmem:[#allocation5 + $0x8] sm:$0xff] %v224
        %240 = vst [vmem:[#allocation5 + $0x10] sm:$0xff] %v225
        %241 = vst [vmem:[#allocation5 + $0x18] sm:$0xff] %v226
        %242 = vst [vmem:[#allocation5 + $0x20] sm:$0xff] %v227
        %243 = vst [vmem:[#allocation5 + $0x28] sm:$0xff] %v228
        %244 = vst [vmem:[#allocation5 + $0x30] sm:$0xff] %v229
        %245 = vst [vmem:[#allocation5 + $0x38] sm:$0xff] %v230
        %246 = vst [vmem:[#allocation5 + $0x40] sm:$0xff] %v231
        %247 = vst [vmem:[#allocation5 + $0x48] sm:$0xff] %v232
        %248 = vst [vmem:[#allocation5 + $0x50] sm:$0xff] %v233
        %249 = vst [vmem:[#allocation5 + $0x58] sm:$0xff] %v234
        %250 = vst [vmem:[#allocation5 + $0x60] sm:$0xff] %v235
        %251 = vst [vmem:[#allocation5 + $0x68] sm:$0xff] %v236
        %252 = vst [vmem:[#allocation5 + $0x70] sm:$0xff] %v237
        // Predicated region
        $region33: #{tpu_custom_call.1} parent=23 // pred_check
          %p253 = pneg %p55
        $region34: #{tpu_custom_call.1} parent=23 // pred_check_branch
          %255 = sbr.rel (%p253) target = $region36
        $region35: #{tpu_custom_call.1} parent=23 // pred_region
          %s257 = ssub.s32 1920, 1920
          %258 = vsyncadd [#allocation4], %s257
          %s260 = sshll.u32 [#allocation5], 4
          %s261 = int_to_ptr.vmem [resolvable:$true] %s260
          %263 = dma.vmem_to_hbm [thread:$0]  %s261, 1920, %s1, [#allocation4]
        $region36: #{tpu_custom_call.1} parent=23 // pred_fallthru
          _
        // Predicated region
        $region37: #{tpu_custom_call.1} parent=23 // pred_check
          %p264 = pneg %p55
        $region38: #{tpu_custom_call.1} parent=23 // pred_check_branch
          %266 = sbr.rel (%p264) target = $region40
        $region39: #{tpu_custom_call.1} parent=23 // pred_region
          %267 = dma.done [#allocation4], 1920
        $region40: #{tpu_custom_call.1} parent=23 // pred_fallthru
          _
      $region24: #{tpu_custom_call.1} parent=5 // pred_fallthru
        _
      %p268 = scmp.le.s32.totalorder 2, %s11
      // Predicated region
      $region41: #{tpu_custom_call.1} parent=5 // pred_check
        %p269 = pneg %p268
      $region42: #{tpu_custom_call.1} parent=5 // pred_check_branch
        %271 = sbr.rel (%p269) target = $region44
      $region43: #{tpu_custom_call.1} parent=5 // pred_region
        %s272 = ssub.s32 %s11, 2
      $region44: #{tpu_custom_call.1} parent=5 // pred_fallthru
        _
    $region6: #{tpu_custom_call.1} parent=1 // loop_footer
      %s15 = sadd.s32 1, %s11
    $region7: #{tpu_custom_call.1} parent=1 // loop_footer_branch
      %10 = sbr.rel target = $region3
    $region8: #{tpu_custom_call.1} parent=1 // loop_exit
      _
    %273 = vsyncpa [#allocation3], 1
    %s274 = scalar_lea.sflag [#allocation3], 1
    %275 = vsyncpa %s274, 1
    %276 = vsyncpa [#allocation4], 1
    %s277 = scalar_lea.sflag [#allocation4], 1
    %278 = vsyncpa %s277, 1

</llo_original>
